<compile_context>
chip_gen: v6e
topology: v6e:2x2x1
jax: 0.10.0
libtpu: 0.0.40
codegen_flags: <defaults>
</compile_context>

<pallas_src>
import jax
import jax.numpy as jnp
from jax.experimental import pallas as pl
from jax.experimental.pallas import tpu as pltpu


_NEG_SLOPE = 0.1


def _leaky_relu(v, slope=_NEG_SLOPE):
    return jnp.where(v > 0, v, slope * v)


def _round_up(n, m):
    return ((n + m - 1) // m) * m


def pde_kernel(x_ref, w1_ref, b1_ref, w2_ref, b2_ref, o_ref):
    # Layer 1: (TM, F) @ (F, 128) + (1, 128) -> LeakyReLU(0.1); f32 MXU accumulate.
    h = jnp.dot(x_ref[...], w1_ref[...], preferred_element_type=jnp.float32)
    h = _leaky_relu(h + b1_ref[...].astype(jnp.float32))
    # Layer 2: (TM, 128) @ (128, 64) + (1, 64) -> LeakyReLU(0.1).
    y = jnp.dot(h, w2_ref[...], preferred_element_type=jnp.float32)
    y = _leaky_relu(y + b2_ref[...].astype(jnp.float32))
    o_ref[...] = y.astype(o_ref.dtype)


def pde_forward(x, w1, b1, w2, b2, *, tm=4096, out_dtype=jnp.float32):
    """Fused PDE forward.

    x : (B, ...)            flattened to (B, input_size); any float dtype
    w1: (input_size, 128)   pre-transposed from torch's (128, input_size)
    b1: (1, 128)            pre-reshaped (one-time, in init/prep)
    w2: (128, 64)           pre-transposed
    b2: (1, 64)             pre-reshaped
    tm: batch tile (rows per grid step); multiple of 8. 2048-8192 amortizes the
        per-step overhead; 4096 is safe for v5e's 16 MiB scoped-VMEM default
        and v7x's 32 MiB (x tile lane-pads (tm,32)->(tm,128) in VMEM).
    out_dtype: output dtype; default f32 matches the torch module. bf16 halves
        writeback bytes if downstream tolerates it.
    """
    batch = x.shape[0]
    x2d = x.reshape(batch, -1)
    f_in = x2d.shape[1]
    hidden = w1.shape[1]
    out_f = w2.shape[1]

    # Batch tile: small batches use the whole batch as one (or two) tiles;
    # otherwise split into >= 2 grid steps so both v7x TensorCores get work,
    # capped at tm. The ragged last block is handled by Pallas write masking.
    if batch <= 8:
        tm_eff = batch
    else:
        tm_eff = min(tm, _round_up(pl.cdiv(batch, 2), 8))
    grid = (pl.cdiv(batch, tm_eff),)

    flops = 2 * batch * (f_in * hidden + hidden * out_f)
    bytes_accessed = (
        x2d.size * x2d.dtype.itemsize
        + batch * out_f * jnp.dtype(out_dtype).itemsize
        + w1.size * w1.dtype.itemsize
        + b1.size * b1.dtype.itemsize
        + w2.size * w2.dtype.itemsize
        + b2.size * b2.dtype.itemsize
    )

    return pl.pallas_call(
        pde_kernel,
        out_shape=jax.ShapeDtypeStruct((batch, out_f), out_dtype),
        grid_spec=pltpu.PrefetchScalarGridSpec(
            num_scalar_prefetch=0,
            grid=grid,
            in_specs=[
                pl.BlockSpec((tm_eff, f_in), lambda i: (i, 0)),    # x tile (streamed)
                pl.BlockSpec((f_in, hidden), lambda i: (0, 0)),    # w1 (VMEM-resident)
                pl.BlockSpec((1, hidden), lambda i: (0, 0)),       # b1 (VMEM-resident)
                pl.BlockSpec((hidden, out_f), lambda i: (0, 0)),   # w2 (VMEM-resident)
                pl.BlockSpec((1, out_f), lambda i: (0, 0)),        # b2 (VMEM-resident)
            ],
            out_specs=pl.BlockSpec((tm_eff, out_f), lambda i: (i, 0)),
        ),
        compiler_params=pltpu.CompilerParams(
            dimension_semantics=("parallel",),  # independent batch tiles -> megacore
        ),
        cost_estimate=pl.CostEstimate(
            flops=flops, transcendentals=0, bytes_accessed=bytes_accessed),
    )(x2d, w1, b1, w2, b2)


def init_pde_params(key, input_size, hidden=128, out=64):
    """Deterministic init mimicking torch.nn.Linear (U(-1/sqrt(fan_in), 1/sqrt(fan_in))).

    Weights are returned already transposed to (in, out); biases already
    reshaped to (1, out) so pde_forward does zero per-call parameter prep.
    """
    k1, k2, k3, k4 = jax.random.split(key, 4)
    bound1 = 1.0 / jnp.sqrt(jnp.float32(input_size))
    bound2 = 1.0 / jnp.sqrt(jnp.float32(hidden))
    w1 = jax.random.uniform(k1, (input_size, hidden), jnp.float32, -bound1, bound1)
    b1 = jax.random.uniform(k2, (1, hidden), jnp.float32, -bound1, bound1)
    w2 = jax.random.uniform(k3, (hidden, out), jnp.float32, -bound2, bound2)
    b2 = jax.random.uniform(k4, (1, out), jnp.float32, -bound2, bound2)
    return w1, b1, w2, b2


if __name__ == "__main__":
    key = jax.random.PRNGKey(0)
    kx, kp = jax.random.split(key)

    # Small input consistent with the module's forward: any shape with batch
    # leading, flattened to (B, input_size). Here x is (24, 2, 16) -> input_size = 32.
    batch, input_size = 24, 32
    x = jax.random.normal(kx, (batch, 2, 16), jnp.float32)

    w1, b1, w2, b2 = init_pde_params(kp, input_size)

    # batch=24 -> tm_eff=16, grid=(2,): exercises the tiled/pipelined path and
    # the ragged (masked) last block.
    out = pde_forward(x, w1, b1, w2, b2)
    out = jax.block_until_ready(out)

    # Pure-JAX reference check of the same math.
    x2d = x.reshape(batch, -1)
    ref = x2d @ w1 + b1
    ref = jnp.where(ref > 0, ref, 0.1 * ref)
    ref = ref @ w2 + b2
    ref = jnp.where(ref > 0, ref, 0.1 * ref)

    assert out.shape == (batch, 64)
    assert jnp.allclose(out, ref, atol=1e-5, rtol=1e-5), "mismatch vs reference"
    print("KERNEL_OK")
</pallas_src>

<mosaic_0001>
module attributes {stable_mosaic.version = 11 : i64} {
  func.func @pde_kernel(%arg0: i32, %arg1: memref<16x32xf32, #tpu.memory_space<vmem>>, %arg2: memref<32x128xf32, #tpu.memory_space<vmem>>, %arg3: memref<1x128xf32, #tpu.memory_space<vmem>>, %arg4: memref<128x64xf32, #tpu.memory_space<vmem>>, %arg5: memref<1x64xf32, #tpu.memory_space<vmem>>, %arg6: memref<16x64xf32, #tpu.memory_space<vmem>>) attributes {dimension_semantics = [#tpu.dimension_semantics<parallel>], iteration_bounds = array<i64: 2>, scalar_prefetch = 0 : i64, scratch_operands = 0 : i64, tpu.core_type = #tpu.core_type<tc>, window_params = [{transform_indices = @transform_0, window_bounds = array<i64: 16, 32>}, {pipeline_mode = #tpu.pipeline_mode<synchronous>, transform_indices = @transform_1, window_bounds = array<i64: 32, 128>}, {pipeline_mode = #tpu.pipeline_mode<synchronous>, transform_indices = @transform_2, window_bounds = array<i64: 1, 128>}, {pipeline_mode = #tpu.pipeline_mode<synchronous>, transform_indices = @transform_3, window_bounds = array<i64: 128, 64>}, {pipeline_mode = #tpu.pipeline_mode<synchronous>, transform_indices = @transform_4, window_bounds = array<i64: 1, 64>}, {transform_indices = @transform_5, window_bounds = array<i64: 16, 64>}]} {
    %c0 = arith.constant 0 : index
    %c0_0 = arith.constant 0 : index
    %0 = vector.load %arg1[%c0, %c0_0] : memref<16x32xf32, #tpu.memory_space<vmem>>, vector<16x32xf32>
    %c0_1 = arith.constant 0 : index
    %c0_2 = arith.constant 0 : index
    %1 = vector.load %arg2[%c0_1, %c0_2] : memref<32x128xf32, #tpu.memory_space<vmem>>, vector<32x128xf32>
    %cst = arith.constant dense<0.000000e+00> : vector<16x128xf32>
    %2 = tpu.matmul %0, %1, %cst {dimension_numbers = #tpu.dot_dimension_numbers<[1], [0], [0], [1], [0, 0, 1, 1], [], []>} : vector<16x32xf32>, vector<32x128xf32>, vector<16x128xf32> -> vector<16x128xf32>
    %c0_3 = arith.constant 0 : index
    %c0_4 = arith.constant 0 : index
    %3 = vector.load %arg3[%c0_3, %c0_4] : memref<1x128xf32, #tpu.memory_space<vmem>>, vector<1x128xf32>
    %4 = vector.broadcast %3 : vector<1x128xf32> to vector<16x128xf32>
    %5 = arith.addf %2, %4 : vector<16x128xf32>
    %cst_5 = arith.constant 0.000000e+00 : f32
    %6 = vector.broadcast %cst_5 : f32 to vector<16x128xf32>
    %7 = arith.cmpf ogt, %5, %6 : vector<16x128xf32>
    %cst_6 = arith.constant 1.000000e-01 : f32
    %8 = vector.broadcast %cst_6 : f32 to vector<16x128xf32>
    %9 = arith.mulf %8, %5 : vector<16x128xf32>
    %10 = arith.select %7, %5, %9 : vector<16x128xi1>, vector<16x128xf32>
    %c0_7 = arith.constant 0 : index
    %c0_8 = arith.constant 0 : index
    %11 = vector.load %arg4[%c0_7, %c0_8] : memref<128x64xf32, #tpu.memory_space<vmem>>, vector<128x64xf32>
    %cst_9 = arith.constant dense<0.000000e+00> : vector<16x64xf32>
    %12 = tpu.matmul %10, %11, %cst_9 {dimension_numbers = #tpu.dot_dimension_numbers<[1], [0], [0], [1], [0, 0, 1, 1], [], []>} : vector<16x128xf32>, vector<128x64xf32>, vector<16x64xf32> -> vector<16x64xf32>
    %c0_10 = arith.constant 0 : index
    %c0_11 = arith.constant 0 : index
    %13 = vector.load %arg5[%c0_10, %c0_11] : memref<1x64xf32, #tpu.memory_space<vmem>>, vector<1x64xf32>
    %14 = vector.broadcast %13 : vector<1x64xf32> to vector<16x64xf32>
    %15 = arith.addf %12, %14 : vector<16x64xf32>
    %cst_12 = arith.constant 0.000000e+00 : f32
    %16 = vector.broadcast %cst_12 : f32 to vector<16x64xf32>
    %17 = arith.cmpf ogt, %15, %16 : vector<16x64xf32>
    %cst_13 = arith.constant 1.000000e-01 : f32
    %18 = vector.broadcast %cst_13 : f32 to vector<16x64xf32>
    %19 = arith.mulf %18, %15 : vector<16x64xf32>
    %20 = arith.select %17, %15, %19 : vector<16x64xi1>, vector<16x64xf32>
    %c0_14 = arith.constant 0 : index
    %c0_15 = arith.constant 0 : index
    %21 = vector.load %arg6[%c0_14, %c0_15] : memref<16x64xf32, #tpu.memory_space<vmem>>, vector<16x64xf32>
    tpu.vector_store %arg6[%c0_14, %c0_15], %20 {strides = array<i32>} : memref<16x64xf32, #tpu.memory_space<vmem>>, vector<16x64xf32>,
    return
  }
  func.func @transform_0(%arg0: i32) -> (i32, i32) {
    %c0_i32 = arith.constant 0 : i32
    %c0_i32_0 = arith.constant 0 : i32
    return %arg0, %c0_i32 : i32, i32
  }
  func.func @transform_1(%arg0: i32) -> (i32, i32) {
    %c0_i32 = arith.constant 0 : i32
    %c0_i32_0 = arith.constant 0 : i32
    %c0_i32_1 = arith.constant 0 : i32
    return %c0_i32, %c0_i32_0 : i32, i32
  }
  func.func @transform_2(%arg0: i32) -> (i32, i32) {
    %c0_i32 = arith.constant 0 : i32
    %c0_i32_0 = arith.constant 0 : i32
    %c0_i32_1 = arith.constant 0 : i32
    return %c0_i32, %c0_i32_0 : i32, i32
  }
  func.func @transform_3(%arg0: i32) -> (i32, i32) {
    %c0_i32 = arith.constant 0 : i32
    %c0_i32_0 = arith.constant 0 : i32
    %c0_i32_1 = arith.constant 0 : i32
    return %c0_i32, %c0_i32_0 : i32, i32
  }
  func.func @transform_4(%arg0: i32) -> (i32, i32) {
    %c0_i32 = arith.constant 0 : i32
    %c0_i32_0 = arith.constant 0 : i32
    %c0_i32_1 = arith.constant 0 : i32
    return %c0_i32, %c0_i32_0 : i32, i32
  }
  func.func @transform_5(%arg0: i32) -> (i32, i32) {
    %c0_i32 = arith.constant 0 : i32
    %c0_i32_0 = arith.constant 0 : i32
    return %arg0, %c0_i32 : i32, i32
  }
}

</mosaic_0001>

<llo_original>
// kernel: tpu_custom_call.1
$region0: #{tpu_custom_call.1}
  #allocation0 [shape = 'u32[]', space=smem, size = 0x4, offset = 0x4, fixed_abs, tag = 'smem constant byte address 0x4 - core index']
  #allocation1 [shape = 'u32[144,128]{1,0:T(1,128)}', space=vmem, size = 0x12000, scoped, tag = 'internal scratch']
  %s0 = inlined_call_operand.vmem [shape: f32[24,32], index: 0, kind: input, shape index: {}]
  %s1 = inlined_call_operand.vmem [shape: f32[32,128], index: 1, kind: input, shape index: {}]
  %s2 = inlined_call_operand.vmem [shape: f32[1,128], index: 2, kind: input, shape index: {}]
  %s3 = inlined_call_operand.vmem [shape: f32[128,64], index: 3, kind: input, shape index: {}]
  %s4 = inlined_call_operand.vmem [shape: f32[1,64], index: 4, kind: input, shape index: {}]
  %s5 = inlined_call_operand.hbm [shape: f32[24,64], index: 5, kind: output, shape index: {}]
  %s6 = sld [smem:[#allocation0]]
  $region53: #{tpu_custom_call.1} parent=0
    _
  %s8 = ssub.s32 1, %s6
  %s9 = scalar_select 0, %s8, %s6
  $region1: #{tpu_custom_call.1} parent=0
    #allocation2 [shape = 'u8[16384]{0}', space=vmem, size = 0x4000, scoped, tag = 'output window, operand 0']
    #allocation3 [shape = 's32[2]{0}', space=sflag, size = 0x8, scoped, tag = 'scoped memory for tpu_custom_call.1']
    %10 = vsyncpa [#allocation3], 0
    %s11 = scalar_lea.sflag [#allocation3], 1
    %12 = vsyncpa %s11, 0
    loop: start=0, step=1, limit=4
    $region2: #{tpu_custom_call.1} parent=1 // loop_pre_header
      _
    $region3: #{tpu_custom_call.1} parent=1 // loop_header
      %s14 = sphi 0, %s18
      %p15 = scmp.ge.s32.totalorder %s14, 4
      %s24 = sphi 0, %s26
      %s27 = sphi 0, %s24
      %s28 = sphi 0, %s27
      %s44 = sphi 0, %s28
      %s48 = sphi 0, %s48
      %s50 = sphi 0, %s48
      %s51 = sphi 0, %s50
      %s65 = sphi 0, %s51
      %s69 = sphi 0, %s69
      %s71 = sphi 0, %s69
      %s72 = sphi 0, %s71
      %s86 = sphi 0, %s72
      %s90 = sphi 0, %s90
      %s92 = sphi 0, %s90
      %s93 = sphi 0, %s92
      %s107 = sphi 0, %s93
      %s111 = sphi 0, %s111
      %s113 = sphi 0, %s111
      %s114 = sphi 0, %s113
      %s128 = sphi 0, %s114
      %s134 = sphi 0, %s136
      %s137 = sphi 0, %s134
      %s138 = sphi 0, %s137
      %s154 = sphi 0, %s138
    $region4: #{tpu_custom_call.1} parent=1 // loop_header_branch
      %17 = sbr.rel (%p15) target = $region8
    $region5: #{tpu_custom_call.1} parent=1 // loop_body
      %s19 = ssub.s32 %s14, 1
      %s20 = ssub.s32 %s14, 2
      %s21 = sadd.s32 %s14, 1
      %s22 = ssub.s32 %s14, %s21
      %p23 = scmp.eq.s32.totalorder %s22, 0
      %s25 = sadd.s32 %s24, 1
      %s26 = scalar_select %p23, %s24, %s25
      %p29 = pneg %p23
      %p30 = scmp.eq.s32.totalorder %s14, 1
      %p31 = por %p29, %p30
      %p32 = scmp.ne.s32.totalorder %s24, %s27
      %p33 = scmp.eq.s32.totalorder %s14, 0
      %p34 = por %p32, %p33
      %p35 = scmp.ne.s32.totalorder %s24, %s27
      %p36 = scmp.eq.s32.totalorder %s19, 1
      %p37 = por %p35, %p36
      %p38 = scmp.ne.s32.totalorder %s27, %s28
      %p39 = scmp.eq.s32.totalorder %s19, 0
      %p40 = por %p38, %p39
      %p41 = scmp.ne.s32.totalorder %s27, %s28
      %p42 = scmp.eq.s32.totalorder %s20, 1
      %p43 = por %p41, %p42
      %p45 = scmp.ne.s32.totalorder %s28, %s44
      %p46 = scmp.eq.s32.totalorder %s20, 0
      %p47 = por %p45, %p46
      %s49 = sadd.s32 %s48, 1
      %p52 = scmp.eq.s32.totalorder %s14, 1
      %p53 = scmp.ne.s32.totalorder %s48, %s50
      %p54 = scmp.eq.s32.totalorder %s14, 0
      %p55 = por %p53, %p54
      %p56 = scmp.ne.s32.totalorder %s48, %s50
      %p57 = scmp.eq.s32.totalorder %s19, 1
      %p58 = por %p56, %p57
      %p59 = scmp.ne.s32.totalorder %s50, %s51
      %p60 = scmp.eq.s32.totalorder %s19, 0
      %p61 = por %p59, %p60
      %p62 = scmp.ne.s32.totalorder %s50, %s51
      %p63 = scmp.eq.s32.totalorder %s20, 1
      %p64 = por %p62, %p63
      %p66 = scmp.ne.s32.totalorder %s51, %s65
      %p67 = scmp.eq.s32.totalorder %s20, 0
      %p68 = por %p66, %p67
      %s70 = sadd.s32 %s69, 1
      %p73 = scmp.eq.s32.totalorder %s14, 1
      %p74 = scmp.ne.s32.totalorder %s69, %s71
      %p75 = scmp.eq.s32.totalorder %s14, 0
      %p76 = por %p74, %p75
      %p77 = scmp.ne.s32.totalorder %s69, %s71
      %p78 = scmp.eq.s32.totalorder %s19, 1
      %p79 = por %p77, %p78
      %p80 = scmp.ne.s32.totalorder %s71, %s72
      %p81 = scmp.eq.s32.totalorder %s19, 0
      %p82 = por %p80, %p81
      %p83 = scmp.ne.s32.totalorder %s71, %s72
      %p84 = scmp.eq.s32.totalorder %s20, 1
      %p85 = por %p83, %p84
      %p87 = scmp.ne.s32.totalorder %s72, %s86
      %p88 = scmp.eq.s32.totalorder %s20, 0
      %p89 = por %p87, %p88
      %s91 = sadd.s32 %s90, 1
      %p94 = scmp.eq.s32.totalorder %s14, 1
      %p95 = scmp.ne.s32.totalorder %s90, %s92
      %p96 = scmp.eq.s32.totalorder %s14, 0
      %p97 = por %p95, %p96
      %p98 = scmp.ne.s32.totalorder %s90, %s92
      %p99 = scmp.eq.s32.totalorder %s19, 1
      %p100 = por %p98, %p99
      %p101 = scmp.ne.s32.totalorder %s92, %s93
      %p102 = scmp.eq.s32.totalorder %s19, 0
      %p103 = por %p101, %p102
      %p104 = scmp.ne.s32.totalorder %s92, %s93
      %p105 = scmp.eq.s32.totalorder %s20, 1
      %p106 = por %p104, %p105
      %p108 = scmp.ne.s32.totalorder %s93, %s107
      %p109 = scmp.eq.s32.totalorder %s20, 0
      %p110 = por %p108, %p109
      %s112 = sadd.s32 %s111, 1
      %p115 = scmp.eq.s32.totalorder %s14, 1
      %p116 = scmp.ne.s32.totalorder %s111, %s113
      %p117 = scmp.eq.s32.totalorder %s14, 0
      %p118 = por %p116, %p117
      %p119 = scmp.ne.s32.totalorder %s111, %s113
      %p120 = scmp.eq.s32.totalorder %s19, 1
      %p121 = por %p119, %p120
      %p122 = scmp.ne.s32.totalorder %s113, %s114
      %p123 = scmp.eq.s32.totalorder %s19, 0
      %p124 = por %p122, %p123
      %p125 = scmp.ne.s32.totalorder %s113, %s114
      %p126 = scmp.eq.s32.totalorder %s20, 1
      %p127 = por %p125, %p126
      %p129 = scmp.ne.s32.totalorder %s114, %s128
      %p130 = scmp.eq.s32.totalorder %s20, 0
      %p131 = por %p129, %p130
      %s132 = ssub.s32 %s14, %s21
      %p133 = scmp.eq.s32.totalorder %s132, 0
      %s135 = sadd.s32 %s134, 1
      %s136 = scalar_select %p133, %s134, %s135
      %p139 = pneg %p133
      %p140 = scmp.eq.s32.totalorder %s14, 1
      %p141 = por %p139, %p140
      %p142 = scmp.ne.s32.totalorder %s134, %s137
      %p143 = scmp.eq.s32.totalorder %s14, 0
      %p144 = por %p142, %p143
      %p145 = scmp.ne.s32.totalorder %s134, %s137
      %p146 = scmp.eq.s32.totalorder %s19, 1
      %p147 = por %p145, %p146
      %p148 = scmp.ne.s32.totalorder %s137, %s138
      %p149 = scmp.eq.s32.totalorder %s19, 0
      %p150 = por %p148, %p149
      %p151 = scmp.ne.s32.totalorder %s137, %s138
      %p152 = scmp.eq.s32.totalorder %s20, 1
      %p153 = por %p151, %p152
      %p155 = scmp.ne.s32.totalorder %s138, %s154
      %p156 = scmp.eq.s32.totalorder %s20, 0
      %p157 = por %p155, %p156
      %p158 = scmp.le.s32.totalorder 1, %s14
      %p159 = scmp.lt.s32.totalorder %s14, 3
      %p160 = pnand %p158, %p159
      %p161 = pneg %p160
      // Predicated region
      $region9: #{tpu_custom_call.1} parent=5 // pred_check
        _
      $region10: #{tpu_custom_call.1} parent=5 // pred_check_branch
        %163 = sbr.rel (%p160) target = $region12
      $region11: #{tpu_custom_call.1} parent=5 // pred_region
        %s164 = ssub.s32 %s14, 1
        // Predicated region
        $region13: #{tpu_custom_call.1} parent=11 // pred_check
          %p165 = pneg %p61
        $region14: #{tpu_custom_call.1} parent=11 // pred_check_branch
          %167 = sbr.rel (%p165) target = $region16
        $region15: #{tpu_custom_call.1} parent=11 // pred_region
          _
        $region16: #{tpu_custom_call.1} parent=11 // pred_fallthru
          _
        // Predicated region
        $region17: #{tpu_custom_call.1} parent=11 // pred_check
          %p168 = pneg %p82
        $region18: #{tpu_custom_call.1} parent=11 // pred_check_branch
          %170 = sbr.rel (%p168) target = $region20
        $region19: #{tpu_custom_call.1} parent=11 // pred_region
          _
        $region20: #{tpu_custom_call.1} parent=11 // pred_fallthru
          _
        // Predicated region
        $region21: #{tpu_custom_call.1} parent=11 // pred_check
          %p171 = pneg %p103
        $region22: #{tpu_custom_call.1} parent=11 // pred_check_branch
          %173 = sbr.rel (%p171) target = $region24
        $region23: #{tpu_custom_call.1} parent=11 // pred_region
          _
        $region24: #{tpu_custom_call.1} parent=11 // pred_fallthru
          _
        // Predicated region
        $region25: #{tpu_custom_call.1} parent=11 // pred_check
          %p174 = pneg %p124
        $region26: #{tpu_custom_call.1} parent=11 // pred_check_branch
          %176 = sbr.rel (%p174) target = $region28
        $region27: #{tpu_custom_call.1} parent=11 // pred_region
          _
        $region28: #{tpu_custom_call.1} parent=11 // pred_fallthru
          _
      $region12: #{tpu_custom_call.1} parent=5 // pred_fallthru
        _
      %p177 = scmp.lt.s32.totalorder %s14, 2
      // Predicated region
      $region29: #{tpu_custom_call.1} parent=5 // pred_check
        %p178 = pneg %p177
      $region30: #{tpu_custom_call.1} parent=5 // pred_check_branch
        %180 = sbr.rel (%p178) target = $region32
      $region31: #{tpu_custom_call.1} parent=5 // pred_region
        // Predicated region
        $region33: #{tpu_custom_call.1} parent=31 // pred_check
          %p181 = pneg %p34
        $region34: #{tpu_custom_call.1} parent=31 // pred_check_branch
          %183 = sbr.rel (%p181) target = $region36
        $region35: #{tpu_custom_call.1} parent=31 // pred_region
          %s184 = smul.u32 2, %s14
          %s185 = ssub.s32 3, %s184
          %p186 = scmp.lt.s32.totalorder %s185, 2
          %s187 = scalar_select %p186, %s185, 2
          %s188 = smul.u32 128, %s187
          %p189 = scmp.lt.s32.totalorder %s184, 2
          %s190 = scalar_select %p189, %s184, 2
          %s191 = smul.addr %s190, 8
          %s192 = scalar_lea.vmem %s0, %s191
          %s193 = smul.u32 2, %s14
          %s194 = ssub.s32 3, %s193
          %p195 = scmp.lt.s32.totalorder %s194, 2
          %s196 = scalar_select %p195, %s194, 2
          %s197 = smul.u32 128, %s196
        $region36: #{tpu_custom_call.1} parent=31 // pred_fallthru
          _
      $region32: #{tpu_custom_call.1} parent=5 // pred_fallthru
        _
      %p198 = scmp.le.s32.totalorder 1, %s14
      %p199 = scmp.lt.s32.totalorder %s14, 3
      %p200 = pnand %p198, %p199
      %p201 = pneg %p200
      // Predicated region
      $region37: #{tpu_custom_call.1} parent=5 // pred_check
        _
      $region38: #{tpu_custom_call.1} parent=5 // pred_check_branch
        %203 = sbr.rel (%p200) target = $region40
      $region39: #{tpu_custom_call.1} parent=5 // pred_region
        %s204 = ssub.s32 %s14, 1
        %s205 = smul.u32 2, %s19
        %s206 = ssub.s32 3, %s205
        %p207 = scmp.lt.s32.totalorder %s206, 2
        %s208 = scalar_select %p207, %s206, 2
        %s209 = smul.u32 128, %s208
        %p210 = scmp.lt.s32.totalorder %s205, 2
        %s211 = scalar_select %p210, %s205, 2
        %s212 = smul.addr %s211, 8
        %s213 = scalar_lea.vmem %s0, %s212
        %p214 = pneg %p40
        %p215 = pneg %p37
        %p216 = pneg %p61
        %p217 = pneg %p58
        %p218 = pneg %p82
        %p219 = pneg %p79
        %p220 = pneg %p103
        %p221 = pneg %p100
        %p222 = pneg %p124
        %p223 = pneg %p121
        %p224 = pneg %p150
        %p225 = pneg %p147
        %s226 = sand.u32 %s137, 1
        %s227 = scalar_lea.sflag [#allocation3], %s226
        %s228 = sand.u32 %s137, 1
        %s229 = smul.addr %s228, 16
        %s230 = scalar_lea.vmem [#allocation2], %s229
        %s231 = smul.u32 2, %s19
        %s232 = ssub.s32 3, %s231
        %p233 = scmp.lt.s32.totalorder %s232, 2
        %s234 = scalar_select %p233, %s232, 2
        %s235 = smul.u32 128, %s234
        %p236 = scmp.lt.s32.totalorder %s231, 2
        %s237 = scalar_select %p236, %s231, 2
        %s238 = smul.addr %s237, 8
        %s239 = scalar_lea.vmem %s0, %s238
        %s240 = smul.u32 2, %s19
        %s241 = ssub.s32 3, %s240
        %p242 = scmp.lt.s32.totalorder %s241, 2
        %s243 = scalar_select %p242, %s241, 2
        %s244 = smul.u32 128, %s243
        %s245 = smul.u32 2, %s19
        %s246 = ssub.s32 3, %s245
        %p247 = scmp.lt.s32.totalorder %s246, 2
        %s248 = scalar_select %p247, %s246, 2
        %s249 = smul.u32 128, %s248
        %v250 = vld [vmem:[%s239] sm:$0xff]
        %v251 = vld [vmem:[%s239 + $0x8] sm:$0xff]
        %v252 = vld [vmem:[%s1] sm:$0xff]
        %v253 = vld [vmem:[%s1 + $0x8] sm:$0xff]
        %v254 = vld [vmem:[%s1 + $0x10] sm:$0xff]
        %v255 = vld [vmem:[%s1 + $0x18] sm:$0xff]
        %v256 = vld [vmem:[%s2] sm:$0x1]
        %v258 = vlaneseq
        %v259 = vshrl.u32 %v258, 7
        %v260 = vsub.s32 0, %v259
        %v261 = vrot.slane %v256, %v260
        %vm263 = vcmask 261120
        %v265 = vsel %vm263, %v250, 0
        %v268 = vsel %vm263, %v251, 0
        %270 = vmatprep.subr.mxu0 0.0
        %271 = vmatpush1.msra.mxu0 0.0
        %272 = vmatprep.subr.mxu0 0.0
        %273 = vmatpush1.msra.mxu0 0.0
        %274 = vmatprep.subr.mxu0 0.0
        %275 = vmatpush1.msra.mxu0 0.0
        %276 = vmatprep.subr.mxu0 0.0
        %277 = vmatpush1.msra.mxu0 0.0
        %278 = vmatprep.subr.mxu0 0.0
        %279 = vmatpush1.msra.mxu0 0.0
        %280 = vmatprep.subr.mxu0 0.0
        %281 = vmatpush1.msra.mxu0 0.0
        %282 = vmatprep.subr.mxu0 0.0
        %283 = vmatpush1.msra.mxu0 0.0
        %284 = vmatprep.subr.mxu0 0.0
        %285 = vmatpush1.msra.mxu0 0.0
        %286 = vmatprep.subr.mxu0 0.0
        %287 = vmatpush1.msra.mxu0 0.0
        %288 = vmatprep.subr.mxu0 0.0
        %289 = vmatpush1.msra.mxu0 0.0
        %290 = vmatprep.subr.mxu0 0.0
        %291 = vmatpush1.msra.mxu0 0.0
        %292 = vmatprep.subr.mxu0 0.0
        %293 = vmatpush1.msra.mxu0 0.0
        %294 = vmatprep.subr.mxu0 0.0
        %295 = vmatpush1.msra.mxu0 %v255
        %296 = vmatprep.subr.mxu0 0.0
        %297 = vmatpush1.msra.mxu0 %v254
        %298 = vmatprep.subr.mxu0 0.0
        %299 = vmatpush1.msra.mxu0 %v253
        %300 = vmatprep.subr.mxu0 0.0
        %301 = vmatpush1.msra.mxu0 %v252
        %302 = vmatprep.subr.mxu0 0.0
        %303 = vmatpush2.msra.mxu0 0.0
        %304 = vmatprep.subr.mxu0 0.0
        %305 = vmatpush2.msra.mxu0 0.0
        %306 = vmatprep.subr.mxu0 0.0
        %307 = vmatpush2.msra.mxu0 0.0
        %308 = vmatprep.subr.mxu0 0.0
        %309 = vmatpush2.msra.mxu0 0.0
        %310 = vmatprep.subr.mxu0 0.0
        %311 = vmatpush2.msra.mxu0 0.0
        %312 = vmatprep.subr.mxu0 0.0
        %313 = vmatpush2.msra.mxu0 0.0
        %314 = vmatprep.subr.mxu0 0.0
        %315 = vmatpush2.msra.mxu0 0.0
        %316 = vmatprep.subr.mxu0 0.0
        %317 = vmatpush2.msra.mxu0 0.0
        %318 = vmatprep.subr.mxu0 0.0
        %319 = vmatpush2.msra.mxu0 0.0
        %320 = vmatprep.subr.mxu0 0.0
        %321 = vmatpush2.msra.mxu0 0.0
        %322 = vmatprep.subr.mxu0 0.0
        %323 = vmatpush2.msra.mxu0 0.0
        %324 = vmatprep.subr.mxu0 0.0
        %325 = vmatpush2.msra.mxu0 0.0
        %326 = vmatprep.subr.mxu0 0.0
        %327 = vmatpush2.msra.mxu0 0.0
        %328 = vmatprep.subr.mxu0 0.0
        %329 = vmatpush2.msra.mxu0 0.0
        %330 = vmatprep.subr.mxu0 0.0
        %331 = vmatpush2.msra.mxu0 0.0
        %332 = vmatprep.subr.mxu0 0.0
        %333 = vmatpush2.msra.mxu0 0.0
        %334 = vmatprep.mubr.f32.mxu0 0.0
        %335 = vmatmul.mubr.f32.gmra.mxu0 %v265
        %v336 = vpop.f32.mrf.mxu0
        %v337 = vadd.f32 %v261, %v336
        %v338 = vpop.f32.mrf.mxu0
        %339 = vmatprep.mubr.f32.mxu0 0.0
        %340 = vmatmul.mubr.f32.gmra.mxu0 %v268
        %v341 = vpop.f32.mrf.mxu0
        %v342 = vadd.f32 %v261, %v341
        %v343 = vpop.f32.mrf.mxu0
        %344 = vdwg.mxu0
        %vm345 = vcmp.gt.f32.partialorder %v337, 0.0
        %vm346 = vcmp.gt.f32.partialorder %v342, 0.0
        %v347 = vmul.f32 %v337, 0.1
        %v348 = vmul.f32 %v342, 0.1
        %v349 = vsel %vm345, %v337, %v347
        %v350 = vsel %vm346, %v342, %v348
        %v351 = vld [vmem:[%s3] sm:$0xff]
        %v352 = vld [vmem:[%s3 + $0x8] sm:$0xff]
        %v353 = vld [vmem:[%s3 + $0x10] sm:$0xff]
        %v354 = vld [vmem:[%s3 + $0x18] sm:$0xff]
        %v355 = vld [vmem:[%s3 + $0x20] sm:$0xff]
        %v356 = vld [vmem:[%s3 + $0x28] sm:$0xff]
        %v357 = vld [vmem:[%s3 + $0x30] sm:$0xff]
        %v358 = vld [vmem:[%s3 + $0x38] sm:$0xff]
        %v359 = vld [vmem:[%s3 + $0x40] sm:$0xff]
        %v360 = vld [vmem:[%s3 + $0x48] sm:$0xff]
        %v361 = vld [vmem:[%s3 + $0x50] sm:$0xff]
        %v362 = vld [vmem:[%s3 + $0x58] sm:$0xff]
        %v363 = vld [vmem:[%s3 + $0x60] sm:$0xff]
        %v364 = vld [vmem:[%s3 + $0x68] sm:$0xff]
        %v365 = vld [vmem:[%s3 + $0x70] sm:$0xff]
        %v366 = vld [vmem:[%s3 + $0x78] sm:$0xff]
        %v367 = vld [vmem:[%s4] sm:$0x1]
        %v369 = vlaneseq
        %v370 = vshrl.u32 %v369, 7
        %v371 = vsub.s32 0, %v370
        %v372 = vrot.slane %v367, %v371
        %374 = vmatprep.subr.mxu0 0.0
        %375 = vmatpush1.msra.mxu0 %v366
        %376 = vmatprep.subr.mxu0 0.0
        %377 = vmatpush1.msra.mxu0 %v365
        %378 = vmatprep.subr.mxu0 0.0
        %379 = vmatpush1.msra.mxu0 %v364
        %380 = vmatprep.subr.mxu0 0.0
        %381 = vmatpush1.msra.mxu0 %v363
        %382 = vmatprep.subr.mxu0 0.0
        %383 = vmatpush1.msra.mxu0 %v362
        %384 = vmatprep.subr.mxu0 0.0
        %385 = vmatpush1.msra.mxu0 %v361
        %386 = vmatprep.subr.mxu0 0.0
        %387 = vmatpush1.msra.mxu0 %v360
        %388 = vmatprep.subr.mxu0 0.0
        %389 = vmatpush1.msra.mxu0 %v359
        %390 = vmatprep.subr.mxu0 0.0
        %391 = vmatpush1.msra.mxu0 %v358
        %392 = vmatprep.subr.mxu0 0.0
        %393 = vmatpush1.msra.mxu0 %v357
        %394 = vmatprep.subr.mxu0 0.0
        %395 = vmatpush1.msra.mxu0 %v356
        %396 = vmatprep.subr.mxu0 0.0
        %397 = vmatpush1.msra.mxu0 %v355
        %398 = vmatprep.subr.mxu0 0.0
        %399 = vmatpush1.msra.mxu0 %v354
        %400 = vmatprep.subr.mxu0 0.0
        %401 = vmatpush1.msra.mxu0 %v353
        %402 = vmatprep.subr.mxu0 0.0
        %403 = vmatpush1.msra.mxu0 %v352
        %404 = vmatprep.subr.mxu0 0.0
        %405 = vmatpush1.msra.mxu0 %v351
        %406 = vmatprep.subr.mxu0 0.0
        %407 = vmatpush2.msra.mxu0 0.0
        %408 = vmatprep.subr.mxu0 0.0
        %409 = vmatpush2.msra.mxu0 0.0
        %410 = vmatprep.subr.mxu0 0.0
        %411 = vmatpush2.msra.mxu0 0.0
        %412 = vmatprep.subr.mxu0 0.0
        %413 = vmatpush2.msra.mxu0 0.0
        %414 = vmatprep.subr.mxu0 0.0
        %415 = vmatpush2.msra.mxu0 0.0
        %416 = vmatprep.subr.mxu0 0.0
        %417 = vmatpush2.msra.mxu0 0.0
        %418 = vmatprep.subr.mxu0 0.0
        %419 = vmatpush2.msra.mxu0 0.0
        %420 = vmatprep.subr.mxu0 0.0
        %421 = vmatpush2.msra.mxu0 0.0
        %422 = vmatprep.subr.mxu0 0.0
        %423 = vmatpush2.msra.mxu0 0.0
        %424 = vmatprep.subr.mxu0 0.0
        %425 = vmatpush2.msra.mxu0 0.0
        %426 = vmatprep.subr.mxu0 0.0
        %427 = vmatpush2.msra.mxu0 0.0
        %428 = vmatprep.subr.mxu0 0.0
        %429 = vmatpush2.msra.mxu0 0.0
        %430 = vmatprep.subr.mxu0 0.0
        %431 = vmatpush2.msra.mxu0 0.0
        %432 = vmatprep.subr.mxu0 0.0
        %433 = vmatpush2.msra.mxu0 0.0
        %434 = vmatprep.subr.mxu0 0.0
        %435 = vmatpush2.msra.mxu0 0.0
        %436 = vmatprep.subr.mxu0 0.0
        %437 = vmatpush2.msra.mxu0 0.0
        %438 = vmatprep.mubr.f32.mxu0 0.0
        %439 = vmatmul.mubr.f32.gmra.mxu0 %v349
        %v440 = vpop.f32.mrf.mxu0
        %v441 = vadd.f32 %v372, %v440
        %v442 = vpop.f32.mrf.mxu0
        %443 = vmatprep.mubr.f32.mxu0 0.0
        %444 = vmatmul.mubr.f32.gmra.mxu0 %v350
        %v445 = vpop.f32.mrf.mxu0
        %v446 = vadd.f32 %v372, %v445
        %v447 = vpop.f32.mrf.mxu0
        %448 = vdwg.mxu0
        %vm449 = vcmp.gt.f32.partialorder %v441, 0.0
        %vm450 = vcmp.gt.f32.partialorder %v446, 0.0
        %v451 = vmul.f32 %v441, 0.1
        %v452 = vmul.f32 %v446, 0.1
        %v453 = vsel %vm449, %v441, %v451
        %v454 = vsel %vm450, %v446, %v452
        %vm455 = vcmask 523264
        %456 = vst.msk [vmem:[%s230] sm:$0xff] %vm455, %v453
        %457 = vst.msk [vmem:[%s230 + $0x8] sm:$0xff] %vm455, %v454
        %s458 = sand.u32 %s137, 1
        %s459 = scalar_lea.sflag [#allocation3], %s458
        %s460 = sand.u32 %s137, 1
        %s461 = smul.addr %s460, 16
        %s462 = scalar_lea.vmem [#allocation2], %s461
        // Predicated region
        $region41: #{tpu_custom_call.1} parent=39 // pred_check
          %p463 = pneg %p147
        $region42: #{tpu_custom_call.1} parent=39 // pred_check_branch
          %465 = sbr.rel (%p463) target = $region44
        $region43: #{tpu_custom_call.1} parent=39 // pred_region
          %s466 = smul.u32 2, %s19
          %s467 = ssub.s32 3, %s466
          %p468 = scmp.lt.s32.totalorder %s467, 2
          %s469 = scalar_select %p468, %s467, 2
          %s470 = smul.u32 128, %s469
          %s472 = ssub.s32 256, %s470
          %473 = vsyncadd %s459, %s472
          %p474 = scmp.ne.s32.totalorder 0, %s470
          %s475 = smul.addr %s466, 128
          %s476 = scalar_lea.hbm %s5, %s475
          %s477 = smul.u32 8, %s469
          %s478 = sshll.u32 %s462, 4
          %s479 = int_to_ptr.vmem [resolvable:$true] %s478
          %s480 = sshll.u32 %s477, 4
          %484 = dma.vmem_to_hbm [thread:$0]  (%p474), %s479, %s480, %s476, %s459, 128, 128, 8
        $region44: #{tpu_custom_call.1} parent=39 // pred_fallthru
          _
      $region40: #{tpu_custom_call.1} parent=5 // pred_fallthru
        _
      %p485 = scmp.le.s32.totalorder 2, %s14
      // Predicated region
      $region45: #{tpu_custom_call.1} parent=5 // pred_check
        %p486 = pneg %p485
      $region46: #{tpu_custom_call.1} parent=5 // pred_check_branch
        %488 = sbr.rel (%p486) target = $region48
      $region47: #{tpu_custom_call.1} parent=5 // pred_region
        %s489 = ssub.s32 %s14, 2
        // Predicated region
        $region49: #{tpu_custom_call.1} parent=47 // pred_check
          %p490 = pneg %p153
        $region50: #{tpu_custom_call.1} parent=47 // pred_check_branch
          %492 = sbr.rel (%p490) target = $region52
        $region51: #{tpu_custom_call.1} parent=47 // pred_region
          %s493 = sand.u32 %s138, 1
          %s494 = scalar_lea.sflag [#allocation3], %s493
          %s495 = sand.u32 %s138, 1
          %s496 = smul.addr %s495, 16
          %s497 = scalar_lea.vmem [#allocation2], %s496
          %498 = dma.done %s494, 256
        $region52: #{tpu_custom_call.1} parent=47 // pred_fallthru
          _
      $region48: #{tpu_custom_call.1} parent=5 // pred_fallthru
        _
    $region6: #{tpu_custom_call.1} parent=1 // loop_footer
      %s18 = sadd.s32 1, %s14
    $region7: #{tpu_custom_call.1} parent=1 // loop_footer_branch
      %13 = sbr.rel target = $region3
    $region8: #{tpu_custom_call.1} parent=1 // loop_exit
      _
    %499 = vsyncpa [#allocation3], 1
    %s500 = scalar_lea.sflag [#allocation3], 1
    %501 = vsyncpa %s500, 1

</llo_original>
